<compile_context>
chip_gen: v6e
topology: v6e:2x2x1
jax: 0.10.0
libtpu: 0.0.40
codegen_flags: <defaults>
</compile_context>

<pallas_src>
import functools

import jax
import jax.numpy as jnp
from jax.experimental import pallas as pl
from jax.experimental.pallas import tpu as pltpu


_NUM_CORES = 2            # v7x has 2 TensorCores/chip; harmless serial split on v5e/v6e
_VMEM_BUDGET = 20 << 20   # conservative working-set target (fits every generation)
_VMEM_LIMIT = 32 << 20    # explicit scoped-VMEM request (raises v5e's 16 MiB default)


def _round_up(x, m):
    return ((x + m - 1) // m) * m


def _cdiv(a, b):
    return -(-a // b)


def _make_kernel(tile_rows, nf_pad):
    tr = tile_rows

    def kernel(xy_ref, dft_ref, d2_ref, ysq_ref, l1_ref):
        i = pl.program_id(1)

        @pl.when(i == 0)
        def _():
            d2_ref[...] = jnp.zeros_like(d2_ref)
            ysq_ref[...] = jnp.zeros_like(ysq_ref)
            l1_ref[...] = jnp.zeros_like(l1_ref)

        # Single fused MXU matmul per step.  Rows [0:TR) are x frames and
        # [TR:2TR) are y frames; columns [0:NF_PAD) hold the real part and
        # [NF_PAD:2*NF_PAD) the imag part of the window-folded DFT.
        ri = jnp.dot(xy_ref[...], dft_ref[...],
                     preferred_element_type=jnp.float32)
        re = ri[:, :nf_pad]
        im = ri[:, nf_pad:]
        pw = jnp.maximum(re * re + im * im, 1e-7)   # clamped power, x & y halves
        lg = jnp.log(pw)

        x_pow, y_pow = pw[:tr], pw[tr:]
        # (|Y| - |X|)^2 == x_pow + y_pow - 2*sqrt(x_pow*y_pow): exact on the
        # clamped powers, one sqrt per element, exactly 0 on padded cells.
        d2 = x_pow + y_pow - 2.0 * jnp.sqrt(x_pow * y_pow)
        # |log|Y| - log|X|| == 0.5*|log(y_pow) - log(x_pow)|; exactly 0 on pad.
        l1 = 0.5 * jnp.abs(lg[tr:] - lg[:tr])

        # vreg-aligned per-column partials: plain VPU adds into the resident
        # (8, NF_PAD) output blocks, no per-step sublane reduce.
        d2_ref[...] += jnp.sum(d2.reshape(tr // 8, 8, nf_pad), axis=0)
        ysq_ref[...] += jnp.sum(y_pow.reshape(tr // 8, 8, nf_pad), axis=0)
        l1_ref[...] += jnp.sum(l1.reshape(tr // 8, 8, nf_pad), axis=0)

    return kernel


@functools.partial(
    jax.jit,
    static_argnames=("fft_size", "hop_size", "win_length", "use_bf16_matmul"))
def stft_loss(x, y, fft_size=1024, hop_size=120, win_length=600,
              use_bf16_matmul=False):
    """Returns (sc_loss, mag_loss), matching STFTLoss.forward semantics."""
    x = x.astype(jnp.float32)
    y = y.astype(jnp.float32)
    B, T = x.shape
    n_freq = fft_size // 2 + 1
    nf_pad = _round_up(n_freq, 128)

    # Periodic Hann window (torch.hann_window), centered inside the n_fft frame.
    n = jnp.arange(win_length, dtype=jnp.float32)
    win = 0.5 * (1.0 - jnp.cos(2.0 * jnp.pi * n / win_length))
    pad_l = (fft_size - win_length) // 2
    win_full = jnp.pad(win, (pad_l, fft_size - win_length - pad_l))

    # Window-folded DFT, zero-padded to lane-dense columns and fused into a
    # single (n_fft, 2*NF_PAD) RHS:  (frames*win) @ D == frames @ (diag(win)@D)
    k = jnp.arange(fft_size, dtype=jnp.float32)[:, None]
    f = jnp.arange(n_freq, dtype=jnp.float32)[None, :]
    ang = 2.0 * jnp.pi * k * f / fft_size
    cpad = nf_pad - n_freq
    dft = jnp.concatenate(
        [jnp.pad(win_full[:, None] * jnp.cos(ang), ((0, 0), (0, cpad))),
         jnp.pad(win_full[:, None] * (-jnp.sin(ang)), ((0, 0), (0, cpad)))],
        axis=1).astype(jnp.float32)

    # Framing glue (center=True -> reflect pad by n_fft//2 on both sides).
    pad = fft_size // 2

    def frame(sig):
        p = jnp.pad(sig, ((0, 0), (pad, pad)), mode="reflect")
        plen = p.shape[1]
        n_frames = (plen - fft_size) // hop_size + 1
        if fft_size % hop_size == 0:
            # Gather-free framing: n_fft/hop shifted hop-wide slices + concat.
            r = fft_size // hop_size
            n_chunks = plen // hop_size
            chunks = p[:, :n_chunks * hop_size].reshape(B, n_chunks, hop_size)
            fr = jnp.concatenate(
                [chunks[:, c:c + n_frames, :] for c in range(r)], axis=-1)
        else:
            # TODO(synk): non-divisible hop still uses an XLA gather; frame
            # inside the kernel via strided DMA to avoid the fft/hop x HBM blowup.
            idx = (jnp.arange(n_frames)[:, None] * hop_size
                   + jnp.arange(fft_size)[None, :])
            fr = p[:, idx]
        return fr.reshape(-1, fft_size), n_frames

    xf, n_frames = frame(x)
    yf, _ = frame(y)
    R = B * n_frames

    # Row tile: as large as a conservative VMEM budget allows (amortizes the
    # ~0.35us/step overhead), capped at 2048 and at each core's share of R.
    per_row = 16 * fft_size + 28 * nf_pad      # stacked xy tiles (2x buf) + f32 temps
    fixed = 16 * fft_size * nf_pad             # fused DFT RHS (double buffered)
    tr = max(8, (_VMEM_BUDGET - fixed) // per_row)
    tr = min(tr, 2048, _round_up(_cdiv(R, _NUM_CORES), 8))
    tr = max(8, (tr // 8) * 8)

    blocks_per_core = max(1, _cdiv(_cdiv(R, tr), _NUM_CORES))
    n_blocks = _NUM_CORES * blocks_per_core
    r_pad = n_blocks * tr

    xf = jnp.pad(xf, ((0, r_pad - R), (0, 0)))
    yf = jnp.pad(yf, ((0, r_pad - R), (0, 0)))

    # Stack the x tile over the y tile per block so each grid step is a single
    # (2*TR, n_fft) @ (n_fft, 2*NF_PAD) matmul against the shared DFT RHS.
    xy = jnp.concatenate(
        [xf.reshape(n_blocks, tr, fft_size),
         yf.reshape(n_blocks, tr, fft_size)], axis=1
    ).reshape(n_blocks * 2 * tr, fft_size)

    if use_bf16_matmul:
        # Optional ~3x MXU throughput; shifts the losses by ~1e-3 relative.
        xy = xy.astype(jnp.bfloat16)
        dft = dft.astype(jnp.bfloat16)

    kernel = _make_kernel(tr, nf_pad)

    grid_spec = pltpu.PrefetchScalarGridSpec(
        num_scalar_prefetch=0,
        grid=(_NUM_CORES, blocks_per_core),
        in_specs=[
            pl.BlockSpec((2 * tr, fft_size),
                         lambda c, i: (c * blocks_per_core + i, 0)),
            pl.BlockSpec((fft_size, 2 * nf_pad), lambda c, i: (0, 0)),
        ],
        out_specs=(
            pl.BlockSpec((8, nf_pad), lambda c, i: (c, 0)),
            pl.BlockSpec((8, nf_pad), lambda c, i: (c, 0)),
            pl.BlockSpec((8, nf_pad), lambda c, i: (c, 0)),
        ),
    )

    out_sds = jax.ShapeDtypeStruct((8 * _NUM_CORES, nf_pad), jnp.float32)
    d2_p, ysq_p, l1_p = pl.pallas_call(
        kernel,
        out_shape=(out_sds, out_sds, out_sds),
        grid_spec=grid_spec,
        compiler_params=pltpu.CompilerParams(
            dimension_semantics=("parallel", "arbitrary"),
            vmem_limit_bytes=_VMEM_LIMIT),
    )(xy, dft)

    # Padded frame rows / padded DFT columns contribute exactly 0 to d2/l1 and
    # exactly 1e-7 per cell to ||Y||^2: subtract the static bias here.
    ysq_bias = 1e-7 * float(r_pad * nf_pad - R * n_freq)

    d2_sum = jnp.sum(d2_p)
    ysq_sum = jnp.sum(ysq_p) - ysq_bias
    l1_sum = jnp.sum(l1_p)

    # sc_loss = ||Y_mag - X_mag||_F / ||Y_mag||_F
    sc_loss = jnp.sqrt(d2_sum) / jnp.sqrt(ysq_sum)
    # mag_loss = mean |log Y_mag - log X_mag|
    mag_loss = l1_sum / float(R * n_freq)
    return sc_loss, mag_loss


def _reference_stft_loss(x, y, fft_size, hop_size, win_length):
    """Pure-JAX reference (rfft-based), matching torch.stft semantics."""
    n = jnp.arange(win_length, dtype=jnp.float32)
    win = 0.5 * (1.0 - jnp.cos(2.0 * jnp.pi * n / win_length))
    pad_l = (fft_size - win_length) // 2
    win_full = jnp.pad(win, (pad_l, fft_size - win_length - pad_l))

    def mag(sig):
        p = jnp.pad(sig, ((0, 0), (fft_size // 2, fft_size // 2)), mode="reflect")
        n_frames = (p.shape[1] - fft_size) // hop_size + 1
        idx = (jnp.arange(n_frames)[:, None] * hop_size
               + jnp.arange(fft_size)[None, :])
        fr = p[:, idx] * win_full
        spec = jnp.fft.rfft(fr, axis=-1)
        return jnp.sqrt(jnp.maximum(jnp.abs(spec) ** 2, 1e-7))

    xm, ym = mag(x.astype(jnp.float32)), mag(y.astype(jnp.float32))
    sc = jnp.sqrt(jnp.sum((ym - xm) ** 2)) / jnp.sqrt(jnp.sum(ym ** 2))
    mg = jnp.mean(jnp.abs(jnp.log(ym) - jnp.log(xm)))
    return sc, mg


if __name__ == "__main__":
    key = jax.random.PRNGKey(0)
    kx, ky = jax.random.split(key)
    B, T = 2, 512
    x = jax.random.normal(kx, (B, T), dtype=jnp.float32)
    y = jax.random.normal(ky, (B, T), dtype=jnp.float32)

    sc_loss, mag_loss = stft_loss(x, y, fft_size=128, hop_size=32, win_length=64)
    jax.block_until_ready((sc_loss, mag_loss))

    sc_ref, mag_ref = _reference_stft_loss(x, y, 128, 32, 64)
    assert jnp.allclose(sc_loss, sc_ref, rtol=1e-3, atol=1e-4), (sc_loss, sc_ref)
    assert jnp.allclose(mag_loss, mag_ref, rtol=1e-3, atol=1e-4), (mag_loss, mag_ref)

    print("KERNEL_OK")
</pallas_src>

<mosaic_0001>
module attributes {stable_mosaic.version = 11 : i64} {
  func.func @kernel(%arg0: i32, %arg1: i32, %arg2: memref<48x128xf32, #tpu.memory_space<vmem>>, %arg3: memref<128x256xf32, #tpu.memory_space<vmem>>, %arg4: memref<8x128xf32, #tpu.memory_space<vmem>>, %arg5: memref<8x128xf32, #tpu.memory_space<vmem>>, %arg6: memref<8x128xf32, #tpu.memory_space<vmem>>) attributes {dimension_semantics = [#tpu.dimension_semantics<parallel>, #tpu.dimension_semantics<arbitrary>], iteration_bounds = array<i64: 2, 1>, scalar_prefetch = 0 : i64, scratch_operands = 0 : i64, tpu.core_type = #tpu.core_type<tc>, window_params = [{transform_indices = @transform_0, window_bounds = array<i64: 48, 128>}, {pipeline_mode = #tpu.pipeline_mode<synchronous>, transform_indices = @transform_1, window_bounds = array<i64: 128, 256>}, {transform_indices = @transform_2, window_bounds = array<i64: 8, 128>}, {transform_indices = @transform_3, window_bounds = array<i64: 8, 128>}, {transform_indices = @transform_4, window_bounds = array<i64: 8, 128>}]} {
    %c0_i32 = arith.constant 0 : i32
    %0 = arith.cmpi eq, %arg1, %c0_i32 : i32
    %1 = arith.extui %0 : i1 to i32
    %c0_i32_0 = arith.constant 0 : i32
    %2 = arith.cmpi ne, %1, %c0_i32_0 : i32
    scf.if %2 {
      %cst_22 = arith.constant 0.000000e+00 : f32
      %43 = vector.broadcast %cst_22 : f32 to vector<8x128xf32>
      %c0_23 = arith.constant 0 : index
      %c0_24 = arith.constant 0 : index
      %44 = vector.load %arg4[%c0_23, %c0_24] : memref<8x128xf32, #tpu.memory_space<vmem>>, vector<8x128xf32>
      tpu.vector_store %arg4[%c0_23, %c0_24], %43 {strides = array<i32>} : memref<8x128xf32, #tpu.memory_space<vmem>>, vector<8x128xf32>,
      %cst_25 = arith.constant 0.000000e+00 : f32
      %45 = vector.broadcast %cst_25 : f32 to vector<8x128xf32>
      %c0_26 = arith.constant 0 : index
      %c0_27 = arith.constant 0 : index
      %46 = vector.load %arg5[%c0_26, %c0_27] : memref<8x128xf32, #tpu.memory_space<vmem>>, vector<8x128xf32>
      tpu.vector_store %arg5[%c0_26, %c0_27], %45 {strides = array<i32>} : memref<8x128xf32, #tpu.memory_space<vmem>>, vector<8x128xf32>,
      %cst_28 = arith.constant 0.000000e+00 : f32
      %47 = vector.broadcast %cst_28 : f32 to vector<8x128xf32>
      %c0_29 = arith.constant 0 : index
      %c0_30 = arith.constant 0 : index
      %48 = vector.load %arg6[%c0_29, %c0_30] : memref<8x128xf32, #tpu.memory_space<vmem>>, vector<8x128xf32>
      tpu.vector_store %arg6[%c0_29, %c0_30], %47 {strides = array<i32>} : memref<8x128xf32, #tpu.memory_space<vmem>>, vector<8x128xf32>,
    } else {
    }
    %c0 = arith.constant 0 : index
    %c0_1 = arith.constant 0 : index
    %3 = vector.load %arg2[%c0, %c0_1] : memref<48x128xf32, #tpu.memory_space<vmem>>, vector<48x128xf32>
    %c0_2 = arith.constant 0 : index
    %c0_3 = arith.constant 0 : index
    %4 = vector.load %arg3[%c0_2, %c0_3] : memref<128x256xf32, #tpu.memory_space<vmem>>, vector<128x256xf32>
    %cst = arith.constant dense<0.000000e+00> : vector<48x256xf32>
    %5 = tpu.matmul %3, %4, %cst {dimension_numbers = #tpu.dot_dimension_numbers<[1], [0], [0], [1], [0, 0, 1, 1], [], []>} : vector<48x128xf32>, vector<128x256xf32>, vector<48x256xf32> -> vector<48x256xf32>
    %6 = vector.extract_strided_slice %5 {offsets = [0, 0], sizes = [48, 128], strides = [1, 1]} : vector<48x256xf32> to vector<48x128xf32>
    %7 = vector.extract_strided_slice %5 {offsets = [0, 128], sizes = [48, 128], strides = [1, 1]} : vector<48x256xf32> to vector<48x128xf32>
    %8 = arith.mulf %6, %6 : vector<48x128xf32>
    %9 = arith.mulf %7, %7 : vector<48x128xf32>
    %10 = arith.addf %8, %9 : vector<48x128xf32>
    %cst_4 = arith.constant 1.000000e-07 : f32
    %11 = vector.broadcast %cst_4 : f32 to vector<48x128xf32>
    %12 = arith.maximumf %10, %11 : vector<48x128xf32>
    %13 = math.log %12 : vector<48x128xf32>
    %14 = vector.extract_strided_slice %12 {offsets = [0, 0], sizes = [24, 128], strides = [1, 1]} : vector<48x128xf32> to vector<24x128xf32>
    %15 = vector.extract_strided_slice %12 {offsets = [24, 0], sizes = [24, 128], strides = [1, 1]} : vector<48x128xf32> to vector<24x128xf32>
    %16 = arith.addf %14, %15 : vector<24x128xf32>
    %17 = arith.mulf %14, %15 : vector<24x128xf32>
    %18 = math.sqrt %17 : vector<24x128xf32>
    %cst_5 = arith.constant 2.000000e+00 : f32
    %19 = vector.broadcast %cst_5 : f32 to vector<24x128xf32>
    %20 = arith.mulf %19, %18 : vector<24x128xf32>
    %21 = arith.subf %16, %20 : vector<24x128xf32>
    %22 = vector.extract_strided_slice %13 {offsets = [24, 0], sizes = [24, 128], strides = [1, 1]} : vector<48x128xf32> to vector<24x128xf32>
    %23 = vector.extract_strided_slice %13 {offsets = [0, 0], sizes = [24, 128], strides = [1, 1]} : vector<48x128xf32> to vector<24x128xf32>
    %24 = arith.subf %22, %23 : vector<24x128xf32>
    %25 = math.absf %24 : vector<24x128xf32>
    %cst_6 = arith.constant 5.000000e-01 : f32
    %26 = vector.broadcast %cst_6 : f32 to vector<24x128xf32>
    %27 = arith.mulf %26, %25 : vector<24x128xf32>
    %c0_7 = arith.constant 0 : index
    %c0_8 = arith.constant 0 : index
    %28 = vector.load %arg4[%c0_7, %c0_8] : memref<8x128xf32, #tpu.memory_space<vmem>>, vector<8x128xf32>
    %29 = vector.shape_cast %21 : vector<24x128xf32> to vector<3x8x128xf32>
    %cst_9 = arith.constant dense<0.000000e+00> : vector<8x128xf32>
    %30 = vector.multi_reduction <add>, %29, %cst_9 [0] : vector<3x8x128xf32> to vector<8x128xf32>
    %31 = arith.addf %28, %30 : vector<8x128xf32>
    %c0_10 = arith.constant 0 : index
    %c0_11 = arith.constant 0 : index
    %32 = vector.load %arg4[%c0_10, %c0_11] : memref<8x128xf32, #tpu.memory_space<vmem>>, vector<8x128xf32>
    tpu.vector_store %arg4[%c0_10, %c0_11], %31 {strides = array<i32>} : memref<8x128xf32, #tpu.memory_space<vmem>>, vector<8x128xf32>,
    %c0_12 = arith.constant 0 : index
    %c0_13 = arith.constant 0 : index
    %33 = vector.load %arg5[%c0_12, %c0_13] : memref<8x128xf32, #tpu.memory_space<vmem>>, vector<8x128xf32>
    %34 = vector.shape_cast %15 : vector<24x128xf32> to vector<3x8x128xf32>
    %cst_14 = arith.constant dense<0.000000e+00> : vector<8x128xf32>
    %35 = vector.multi_reduction <add>, %34, %cst_14 [0] : vector<3x8x128xf32> to vector<8x128xf32>
    %36 = arith.addf %33, %35 : vector<8x128xf32>
    %c0_15 = arith.constant 0 : index
    %c0_16 = arith.constant 0 : index
    %37 = vector.load %arg5[%c0_15, %c0_16] : memref<8x128xf32, #tpu.memory_space<vmem>>, vector<8x128xf32>
    tpu.vector_store %arg5[%c0_15, %c0_16], %36 {strides = array<i32>} : memref<8x128xf32, #tpu.memory_space<vmem>>, vector<8x128xf32>,
    %c0_17 = arith.constant 0 : index
    %c0_18 = arith.constant 0 : index
    %38 = vector.load %arg6[%c0_17, %c0_18] : memref<8x128xf32, #tpu.memory_space<vmem>>, vector<8x128xf32>
    %39 = vector.shape_cast %27 : vector<24x128xf32> to vector<3x8x128xf32>
    %cst_19 = arith.constant dense<0.000000e+00> : vector<8x128xf32>
    %40 = vector.multi_reduction <add>, %39, %cst_19 [0] : vector<3x8x128xf32> to vector<8x128xf32>
    %41 = arith.addf %38, %40 : vector<8x128xf32>
    %c0_20 = arith.constant 0 : index
    %c0_21 = arith.constant 0 : index
    %42 = vector.load %arg6[%c0_20, %c0_21] : memref<8x128xf32, #tpu.memory_space<vmem>>, vector<8x128xf32>
    tpu.vector_store %arg6[%c0_20, %c0_21], %41 {strides = array<i32>} : memref<8x128xf32, #tpu.memory_space<vmem>>, vector<8x128xf32>,
    return
  }
  func.func @transform_0(%arg0: i32, %arg1: i32) -> (i32, i32) {
    %c1_i32 = arith.constant 1 : i32
    %0 = arith.muli %arg0, %c1_i32 : i32
    %1 = arith.addi %0, %arg1 : i32
    %c0_i32 = arith.constant 0 : i32
    %c0_i32_0 = arith.constant 0 : i32
    return %1, %c0_i32 : i32, i32
  }
  func.func @transform_1(%arg0: i32, %arg1: i32) -> (i32, i32) {
    %c0_i32 = arith.constant 0 : i32
    %c0_i32_0 = arith.constant 0 : i32
    %c0_i32_1 = arith.constant 0 : i32
    return %c0_i32, %c0_i32_0 : i32, i32
  }
  func.func @transform_2(%arg0: i32, %arg1: i32) -> (i32, i32) {
    %c0_i32 = arith.constant 0 : i32
    %c0_i32_0 = arith.constant 0 : i32
    return %arg0, %c0_i32 : i32, i32
  }
  func.func @transform_3(%arg0: i32, %arg1: i32) -> (i32, i32) {
    %c0_i32 = arith.constant 0 : i32
    %c0_i32_0 = arith.constant 0 : i32
    return %arg0, %c0_i32 : i32, i32
  }
  func.func @transform_4(%arg0: i32, %arg1: i32) -> (i32, i32) {
    %c0_i32 = arith.constant 0 : i32
    %c0_i32_0 = arith.constant 0 : i32
    return %arg0, %c0_i32 : i32, i32
  }
}

</mosaic_0001>

<llo_original>
// kernel: stft_loss.1
$region0: #{stft_loss.1}
  #allocation0 [shape = 'u32[]', space=smem, size = 0x4, offset = 0x4, fixed_abs, tag = 'smem constant byte address 0x4 - core index']
  #allocation1 [shape = 'u32[144,128]{1,0:T(1,128)}', space=vmem, size = 0x12000, scoped, tag = 'internal scratch']
  %s0 = inlined_call_operand.vmem [shape: f32[96,128], index: 0, kind: input, shape index: {}]
  %s1 = inlined_call_operand.vmem [shape: f32[128,256], index: 1, kind: input, shape index: {}]
  %s2 = inlined_call_operand.vmem [shape: f32[16,128], index: 2, kind: output, shape index: {0}]
  %s3 = inlined_call_operand.vmem [shape: f32[16,128], index: 3, kind: output, shape index: {1}]
  %s4 = inlined_call_operand.vmem [shape: f32[16,128], index: 4, kind: output, shape index: {2}]
  %5 = xla_tuple %s2, %s3, %s4
  %s6 = sld [smem:[#allocation0]]
  $region61: #{stft_loss.1} parent=0
    _
  %s8 = ssub.s32 1, %s6
  %s9 = scalar_select 0, %s8, %s6
  loop: start=0, step=1, limit=4
  $region2: #{stft_loss.1} parent=0 // loop_pre_header
    _
  $region3: #{stft_loss.1} parent=0 // loop_header
    %s11 = sphi 0, %s15
    %p12 = scmp.ge.s32.totalorder %s11, 4
    %s18 = sphi 0, %s30
    %s19 = sphi 0, %s26
    %s20 = sphi 0, %s18
    %s21 = sphi 0, %s19
    %s22 = sphi 0, %s20
    %s23 = sphi 0, %s21
    %s35 = sphi 0, %s37
    %s38 = sphi 0, %s35
    %s39 = sphi 0, %s38
    %s55 = sphi 0, %s39
    %s59 = sphi 0, %s59
    %s61 = sphi 0, %s59
    %s62 = sphi 0, %s61
    %s76 = sphi 0, %s62
    %s82 = sphi 0, %s84
    %s85 = sphi 0, %s82
    %s86 = sphi 0, %s85
    %s102 = sphi 0, %s86
    %s108 = sphi 0, %s110
    %s111 = sphi 0, %s108
    %s112 = sphi 0, %s111
    %s128 = sphi 0, %s112
    %s134 = sphi 0, %s136
    %s137 = sphi 0, %s134
    %s138 = sphi 0, %s137
    %s154 = sphi 0, %s138
  $region4: #{stft_loss.1} parent=0 // loop_header_branch
    %14 = sbr.rel (%p12) target = $region8
  $region5: #{stft_loss.1} parent=0 // loop_body
    %s16 = ssub.s32 %s11, 1
    %s17 = ssub.s32 %s11, 2
    %s24 = sadd.s32 1, %s19
    %p25 = scmp.ge.s32.totalorder %s24, 1
    %s26 = scalar_select %p25, 0, %s24
    %s27 = sadd.s32 1, %s18
    %s28 = scalar_select %p25, %s27, %s18
    %p29 = scmp.ge.s32.totalorder %s28, 2
    %s30 = scalar_select %p29, 0, %s28
    %s31 = sadd.s32 %s18, %s19
    %s32 = sadd.s32 %s30, %s26
    %s33 = ssub.s32 %s31, %s32
    %p34 = scmp.eq.s32.totalorder %s33, 0
    %s36 = sadd.s32 %s35, 1
    %s37 = scalar_select %p34, %s35, %s36
    %p40 = pneg %p34
    %p41 = scmp.eq.s32.totalorder %s11, 1
    %p42 = por %p40, %p41
    %p43 = scmp.ne.s32.totalorder %s35, %s38
    %p44 = scmp.eq.s32.totalorder %s11, 0
    %p45 = por %p43, %p44
    %p46 = scmp.ne.s32.totalorder %s35, %s38
    %p47 = scmp.eq.s32.totalorder %s16, 1
    %p48 = por %p46, %p47
    %p49 = scmp.ne.s32.totalorder %s38, %s39
    %p50 = scmp.eq.s32.totalorder %s16, 0
    %p51 = por %p49, %p50
    %p52 = scmp.ne.s32.totalorder %s38, %s39
    %p53 = scmp.eq.s32.totalorder %s17, 1
    %p54 = por %p52, %p53
    %p56 = scmp.ne.s32.totalorder %s39, %s55
    %p57 = scmp.eq.s32.totalorder %s17, 0
    %p58 = por %p56, %p57
    %s60 = sadd.s32 %s59, 1
    %p63 = scmp.eq.s32.totalorder %s11, 1
    %p64 = scmp.ne.s32.totalorder %s59, %s61
    %p65 = scmp.eq.s32.totalorder %s11, 0
    %p66 = por %p64, %p65
    %p67 = scmp.ne.s32.totalorder %s59, %s61
    %p68 = scmp.eq.s32.totalorder %s16, 1
    %p69 = por %p67, %p68
    %p70 = scmp.ne.s32.totalorder %s61, %s62
    %p71 = scmp.eq.s32.totalorder %s16, 0
    %p72 = por %p70, %p71
    %p73 = scmp.ne.s32.totalorder %s61, %s62
    %p74 = scmp.eq.s32.totalorder %s17, 1
    %p75 = por %p73, %p74
    %p77 = scmp.ne.s32.totalorder %s62, %s76
    %p78 = scmp.eq.s32.totalorder %s17, 0
    %p79 = por %p77, %p78
    %s80 = ssub.s32 %s18, %s30
    %p81 = scmp.eq.s32.totalorder %s80, 0
    %s83 = sadd.s32 %s82, 1
    %s84 = scalar_select %p81, %s82, %s83
    %p87 = pneg %p81
    %p88 = scmp.eq.s32.totalorder %s11, 1
    %p89 = por %p87, %p88
    %p90 = scmp.ne.s32.totalorder %s82, %s85
    %p91 = scmp.eq.s32.totalorder %s11, 0
    %p92 = por %p90, %p91
    %p93 = scmp.ne.s32.totalorder %s82, %s85
    %p94 = scmp.eq.s32.totalorder %s16, 1
    %p95 = por %p93, %p94
    %p96 = scmp.ne.s32.totalorder %s85, %s86
    %p97 = scmp.eq.s32.totalorder %s16, 0
    %p98 = por %p96, %p97
    %p99 = scmp.ne.s32.totalorder %s85, %s86
    %p100 = scmp.eq.s32.totalorder %s17, 1
    %p101 = por %p99, %p100
    %p103 = scmp.ne.s32.totalorder %s86, %s102
    %p104 = scmp.eq.s32.totalorder %s17, 0
    %p105 = por %p103, %p104
    %s106 = ssub.s32 %s18, %s30
    %p107 = scmp.eq.s32.totalorder %s106, 0
    %s109 = sadd.s32 %s108, 1
    %s110 = scalar_select %p107, %s108, %s109
    %p113 = pneg %p107
    %p114 = scmp.eq.s32.totalorder %s11, 1
    %p115 = por %p113, %p114
    %p116 = scmp.ne.s32.totalorder %s108, %s111
    %p117 = scmp.eq.s32.totalorder %s11, 0
    %p118 = por %p116, %p117
    %p119 = scmp.ne.s32.totalorder %s108, %s111
    %p120 = scmp.eq.s32.totalorder %s16, 1
    %p121 = por %p119, %p120
    %p122 = scmp.ne.s32.totalorder %s111, %s112
    %p123 = scmp.eq.s32.totalorder %s16, 0
    %p124 = por %p122, %p123
    %p125 = scmp.ne.s32.totalorder %s111, %s112
    %p126 = scmp.eq.s32.totalorder %s17, 1
    %p127 = por %p125, %p126
    %p129 = scmp.ne.s32.totalorder %s112, %s128
    %p130 = scmp.eq.s32.totalorder %s17, 0
    %p131 = por %p129, %p130
    %s132 = ssub.s32 %s18, %s30
    %p133 = scmp.eq.s32.totalorder %s132, 0
    %s135 = sadd.s32 %s134, 1
    %s136 = scalar_select %p133, %s134, %s135
    %p139 = pneg %p133
    %p140 = scmp.eq.s32.totalorder %s11, 1
    %p141 = por %p139, %p140
    %p142 = scmp.ne.s32.totalorder %s134, %s137
    %p143 = scmp.eq.s32.totalorder %s11, 0
    %p144 = por %p142, %p143
    %p145 = scmp.ne.s32.totalorder %s134, %s137
    %p146 = scmp.eq.s32.totalorder %s16, 1
    %p147 = por %p145, %p146
    %p148 = scmp.ne.s32.totalorder %s137, %s138
    %p149 = scmp.eq.s32.totalorder %s16, 0
    %p150 = por %p148, %p149
    %p151 = scmp.ne.s32.totalorder %s137, %s138
    %p152 = scmp.eq.s32.totalorder %s17, 1
    %p153 = por %p151, %p152
    %p155 = scmp.ne.s32.totalorder %s138, %s154
    %p156 = scmp.eq.s32.totalorder %s17, 0
    %p157 = por %p155, %p156
    %p158 = scmp.le.s32.totalorder 1, %s11
    %p159 = scmp.lt.s32.totalorder %s11, 3
    %p160 = pnand %p158, %p159
    %p161 = pneg %p160
    // Predicated region
    $region9: #{stft_loss.1} parent=5 // pred_check
      _
    $region10: #{stft_loss.1} parent=5 // pred_check_branch
      %163 = sbr.rel (%p160) target = $region12
    $region11: #{stft_loss.1} parent=5 // pred_region
      %s164 = ssub.s32 %s11, 1
      // Predicated region
      $region13: #{stft_loss.1} parent=11 // pred_check
        %p165 = pneg %p72
      $region14: #{stft_loss.1} parent=11 // pred_check_branch
        %167 = sbr.rel (%p165) target = $region16
      $region15: #{stft_loss.1} parent=11 // pred_region
        _
      $region16: #{stft_loss.1} parent=11 // pred_fallthru
        _
    $region12: #{stft_loss.1} parent=5 // pred_fallthru
      _
    %p168 = scmp.lt.s32.totalorder %s11, 2
    // Predicated region
    $region17: #{stft_loss.1} parent=5 // pred_check
      %p169 = pneg %p168
    $region18: #{stft_loss.1} parent=5 // pred_check_branch
      %171 = sbr.rel (%p169) target = $region20
    $region19: #{stft_loss.1} parent=5 // pred_region
      // Predicated region
      $region21: #{stft_loss.1} parent=19 // pred_check
        %p172 = pneg %p45
      $region22: #{stft_loss.1} parent=19 // pred_check_branch
        %174 = sbr.rel (%p172) target = $region24
      $region23: #{stft_loss.1} parent=19 // pred_region
        %s175 = sadd.s32 %s18, %s19
        %s176 = smul.u32 6, %s175
        %p177 = scmp.lt.s32.totalorder %s176, 11
        %s178 = scalar_select %p177, %s176, 11
        %s179 = smul.addr %s178, 8
        %s180 = scalar_lea.vmem %s0, %s179
        %s181 = sadd.s32 %s18, %s19
        %s182 = smul.u32 6, %s181
      $region24: #{stft_loss.1} parent=19 // pred_fallthru
        _
    $region20: #{stft_loss.1} parent=5 // pred_fallthru
      _
    %p183 = scmp.le.s32.totalorder 1, %s11
    %p184 = scmp.lt.s32.totalorder %s11, 3
    %p185 = pnand %p183, %p184
    %p186 = pneg %p185
    // Predicated region
    $region25: #{stft_loss.1} parent=5 // pred_check
      _
    $region26: #{stft_loss.1} parent=5 // pred_check_branch
      %188 = sbr.rel (%p185) target = $region28
    $region27: #{stft_loss.1} parent=5 // pred_region
      %s189 = ssub.s32 %s11, 1
      %s190 = sadd.s32 %s20, %s21
      %s191 = smul.u32 6, %s190
      %p192 = scmp.lt.s32.totalorder %s191, 11
      %s193 = scalar_select %p192, %s191, 11
      %s194 = smul.addr %s193, 8
      %s195 = scalar_lea.vmem %s0, %s194
      %p196 = pneg %p51
      %p197 = pneg %p48
      %p198 = pneg %p72
      %p199 = pneg %p69
      %p200 = pneg %p98
      %p201 = pneg %p95
      %p202 = scmp.lt.s32.totalorder %s20, 1
      %s203 = scalar_select %p202, %s20, 1
      %s204 = smul.addr %s203, 8
      %s205 = scalar_lea.vmem %s2, %s204
      %p206 = pneg %p124
      %p207 = pneg %p121
      %p208 = scmp.lt.s32.totalorder %s20, 1
      %s209 = scalar_select %p208, %s20, 1
      %s210 = smul.addr %s209, 8
      %s211 = scalar_lea.vmem %s3, %s210
      %p212 = pneg %p150
      %p213 = pneg %p147
      %p214 = scmp.lt.s32.totalorder %s20, 1
      %s215 = scalar_select %p214, %s20, 1
      %s216 = smul.addr %s215, 8
      %s217 = scalar_lea.vmem %s4, %s216
      %s218 = sadd.s32 %s20, %s21
      %s219 = smul.u32 6, %s218
      %p220 = scmp.lt.s32.totalorder %s219, 11
      %s221 = scalar_select %p220, %s219, 11
      %s222 = smul.addr %s221, 8
      %s223 = scalar_lea.vmem %s0, %s222
      %s224 = sadd.s32 %s20, %s21
      %s225 = smul.u32 6, %s224
      %p226 = scmp.lt.s32.totalorder %s20, 1
      %s227 = scalar_select %p226, %s20, 1
      %s228 = smul.addr %s227, 8
      %s229 = scalar_lea.vmem %s2, %s228
      %p230 = scmp.lt.s32.totalorder %s20, 1
      %s231 = scalar_select %p230, %s20, 1
      %s232 = smul.addr %s231, 8
      %s233 = scalar_lea.vmem %s3, %s232
      %p234 = scmp.lt.s32.totalorder %s20, 1
      %s235 = scalar_select %p234, %s20, 1
      %s236 = smul.addr %s235, 8
      %s237 = scalar_lea.vmem %s4, %s236
      %p238 = scmp.eq.s32.totalorder %s21, 0
      // Predicated region
      $region29: #{stft_loss.1} parent=27 // pred_check
        %p239 = pneg %p238
      $region30: #{stft_loss.1} parent=27 // pred_check_branch
        %241 = sbr.rel (%p239) target = $region32
      $region31: #{stft_loss.1} parent=27 // pred_region
        %242 = vst [vmem:[%s229] sm:$0xff] 0.0
        %243 = vst [vmem:[%s233] sm:$0xff] 0.0
        %244 = vst [vmem:[%s237] sm:$0xff] 0.0
      $region32: #{stft_loss.1} parent=27 // pred_fallthru
        _
      %v245 = vld [vmem:[%s223] sm:$0xff]
      %v246 = vld [vmem:[%s223 + $0x8] sm:$0xff]
      %v247 = vld [vmem:[%s223 + $0x10] sm:$0xff]
      %v248 = vld [vmem:[%s223 + $0x18] sm:$0xff]
      %v249 = vld [vmem:[%s223 + $0x20] sm:$0xff]
      %v250 = vld [vmem:[%s223 + $0x28] sm:$0xff]
      %v251 = vld [vmem:[%s1] sm:$0xff]
      %v252 = vld [vmem:[%s1 + $0x8] sm:$0xff]
      %v253 = vld [vmem:[%s1 + $0x10] sm:$0xff]
      %v254 = vld [vmem:[%s1 + $0x18] sm:$0xff]
      %v255 = vld [vmem:[%s1 + $0x20] sm:$0xff]
      %v256 = vld [vmem:[%s1 + $0x28] sm:$0xff]
      %v257 = vld [vmem:[%s1 + $0x30] sm:$0xff]
      %v258 = vld [vmem:[%s1 + $0x38] sm:$0xff]
      %v259 = vld [vmem:[%s1 + $0x40] sm:$0xff]
      %v260 = vld [vmem:[%s1 + $0x48] sm:$0xff]
      %v261 = vld [vmem:[%s1 + $0x50] sm:$0xff]
      %v262 = vld [vmem:[%s1 + $0x58] sm:$0xff]
      %v263 = vld [vmem:[%s1 + $0x60] sm:$0xff]
      %v264 = vld [vmem:[%s1 + $0x68] sm:$0xff]
      %v265 = vld [vmem:[%s1 + $0x70] sm:$0xff]
      %v266 = vld [vmem:[%s1 + $0x78] sm:$0xff]
      %v267 = vld [vmem:[%s1 + $0x80] sm:$0xff]
      %v268 = vld [vmem:[%s1 + $0x88] sm:$0xff]
      %v269 = vld [vmem:[%s1 + $0x90] sm:$0xff]
      %v270 = vld [vmem:[%s1 + $0x98] sm:$0xff]
      %v271 = vld [vmem:[%s1 + $0xa0] sm:$0xff]
      %v272 = vld [vmem:[%s1 + $0xa8] sm:$0xff]
      %v273 = vld [vmem:[%s1 + $0xb0] sm:$0xff]
      %v274 = vld [vmem:[%s1 + $0xb8] sm:$0xff]
      %v275 = vld [vmem:[%s1 + $0xc0] sm:$0xff]
      %v276 = vld [vmem:[%s1 + $0xc8] sm:$0xff]
      %v277 = vld [vmem:[%s1 + $0xd0] sm:$0xff]
      %v278 = vld [vmem:[%s1 + $0xd8] sm:$0xff]
      %v279 = vld [vmem:[%s1 + $0xe0] sm:$0xff]
      %v280 = vld [vmem:[%s1 + $0xe8] sm:$0xff]
      %v281 = vld [vmem:[%s1 + $0xf0] sm:$0xff]
      %v282 = vld [vmem:[%s1 + $0xf8] sm:$0xff]
      %283 = vmatprep.subr.mxu0 %v282
      %284 = vmatpush1.msra.mxu0 %v281
      %285 = vmatprep.subr.mxu0 %v280
      %286 = vmatpush1.msra.mxu0 %v279
      %287 = vmatprep.subr.mxu0 %v278
      %288 = vmatpush1.msra.mxu0 %v277
      %289 = vmatprep.subr.mxu0 %v276
      %290 = vmatpush1.msra.mxu0 %v275
      %291 = vmatprep.subr.mxu0 %v274
      %292 = vmatpush1.msra.mxu0 %v273
      %293 = vmatprep.subr.mxu0 %v272
      %294 = vmatpush1.msra.mxu0 %v271
      %295 = vmatprep.subr.mxu0 %v270
      %296 = vmatpush1.msra.mxu0 %v269
      %297 = vmatprep.subr.mxu0 %v268
      %298 = vmatpush1.msra.mxu0 %v267
      %299 = vmatprep.subr.mxu0 %v266
      %300 = vmatpush1.msra.mxu0 %v265
      %301 = vmatprep.subr.mxu0 %v264
      %302 = vmatpush1.msra.mxu0 %v263
      %303 = vmatprep.subr.mxu0 %v262
      %304 = vmatpush1.msra.mxu0 %v261
      %305 = vmatprep.subr.mxu0 %v260
      %306 = vmatpush1.msra.mxu0 %v259
      %307 = vmatprep.subr.mxu0 %v258
      %308 = vmatpush1.msra.mxu0 %v257
      %309 = vmatprep.subr.mxu0 %v256
      %310 = vmatpush1.msra.mxu0 %v255
      %311 = vmatprep.subr.mxu0 %v254
      %312 = vmatpush1.msra.mxu0 %v253
      %313 = vmatprep.subr.mxu0 %v252
      %314 = vmatpush1.msra.mxu0 %v251
      %315 = vmatprep.subr.mxu0 0.0
      %316 = vmatpush2.msra.mxu0 0.0
      %317 = vmatprep.subr.mxu0 0.0
      %318 = vmatpush2.msra.mxu0 0.0
      %319 = vmatprep.subr.mxu0 0.0
      %320 = vmatpush2.msra.mxu0 0.0
      %321 = vmatprep.subr.mxu0 0.0
      %322 = vmatpush2.msra.mxu0 0.0
      %323 = vmatprep.subr.mxu0 0.0
      %324 = vmatpush2.msra.mxu0 0.0
      %325 = vmatprep.subr.mxu0 0.0
      %326 = vmatpush2.msra.mxu0 0.0
      %327 = vmatprep.subr.mxu0 0.0
      %328 = vmatpush2.msra.mxu0 0.0
      %329 = vmatprep.subr.mxu0 0.0
      %330 = vmatpush2.msra.mxu0 0.0
      %331 = vmatprep.subr.mxu0 0.0
      %332 = vmatpush2.msra.mxu0 0.0
      %333 = vmatprep.subr.mxu0 0.0
      %334 = vmatpush2.msra.mxu0 0.0
      %335 = vmatprep.subr.mxu0 0.0
      %336 = vmatpush2.msra.mxu0 0.0
      %337 = vmatprep.subr.mxu0 0.0
      %338 = vmatpush2.msra.mxu0 0.0
      %339 = vmatprep.subr.mxu0 0.0
      %340 = vmatpush2.msra.mxu0 0.0
      %341 = vmatprep.subr.mxu0 0.0
      %342 = vmatpush2.msra.mxu0 0.0
      %343 = vmatprep.subr.mxu0 0.0
      %344 = vmatpush2.msra.mxu0 0.0
      %345 = vmatprep.subr.mxu0 0.0
      %346 = vmatpush2.msra.mxu0 0.0
      %347 = vmatprep.mubr.f32.mxu0 0.0
      %348 = vmatmul.mubr.f32.gmra.mxu0 %v245
      %v349 = vpop.f32.mrf.mxu0
      %v350 = vadd.f32 0.0, %v349
      %v351 = vpop.f32.mrf.mxu0
      %v352 = vadd.f32 0.0, %v351
      %353 = vmatprep.mubr.f32.mxu0 0.0
      %354 = vmatmul.mubr.f32.gmra.mxu0 %v246
      %v355 = vpop.f32.mrf.mxu0
      %v356 = vadd.f32 0.0, %v355
      %v357 = vpop.f32.mrf.mxu0
      %v358 = vadd.f32 0.0, %v357
      %359 = vmatprep.mubr.f32.mxu0 0.0
      %360 = vmatmul.mubr.f32.gmra.mxu0 %v247
      %v361 = vpop.f32.mrf.mxu0
      %v362 = vadd.f32 0.0, %v361
      %v363 = vpop.f32.mrf.mxu0
      %v364 = vadd.f32 0.0, %v363
      %365 = vmatprep.mubr.f32.mxu0 0.0
      %366 = vmatmul.mubr.f32.gmra.mxu0 %v248
      %v367 = vpop.f32.mrf.mxu0
      %v368 = vadd.f32 0.0, %v367
      %v369 = vpop.f32.mrf.mxu0
      %v370 = vadd.f32 0.0, %v369
      %371 = vmatprep.mubr.f32.mxu0 0.0
      %372 = vmatmul.mubr.f32.gmra.mxu0 %v249
      %v373 = vpop.f32.mrf.mxu0
      %v374 = vadd.f32 0.0, %v373
      %v375 = vpop.f32.mrf.mxu0
      %v376 = vadd.f32 0.0, %v375
      %377 = vmatprep.mubr.f32.mxu0 0.0
      %378 = vmatmul.mubr.f32.gmra.mxu0 %v250
      %v379 = vpop.f32.mrf.mxu0
      %v380 = vadd.f32 0.0, %v379
      %v381 = vpop.f32.mrf.mxu0
      %v382 = vadd.f32 0.0, %v381
      %383 = vdwg.mxu0
      %v384 = vmul.f32 %v350, %v350
      %v385 = vmul.f32 %v356, %v356
      %v386 = vmul.f32 %v362, %v362
      %v387 = vmul.f32 %v368, %v368
      %v388 = vmul.f32 %v374, %v374
      %v389 = vmul.f32 %v380, %v380
      %v390 = vmul.f32 %v352, %v352
      %v391 = vmul.f32 %v358, %v358
      %v392 = vmul.f32 %v364, %v364
      %v393 = vmul.f32 %v370, %v370
      %v394 = vmul.f32 %v376, %v376
      %v395 = vmul.f32 %v382, %v382
      %v396 = vadd.f32 %v384, %v390
      %v397 = vadd.f32 %v385, %v391
      %v398 = vadd.f32 %v386, %v392
      %v399 = vadd.f32 %v387, %v393
      %v400 = vadd.f32 %v388, %v394
      %v401 = vadd.f32 %v389, %v395
      %v402 = vmax.f32 %v396, 1e-07
      %v403 = vmax.f32 %v397, 1e-07
      %v404 = vmax.f32 %v398, 1e-07
      %v405 = vmax.f32 %v399, 1e-07
      %v406 = vmax.f32 %v400, 1e-07
      %v407 = vmax.f32 %v401, 1e-07
      %v408 = vlog2.pop %v402
      %v409 = vmul.f32 %v408, 0.6931472
      %v410 = vlog2.pop %v403
      %v411 = vmul.f32 %v410, 0.6931472
      %v412 = vlog2.pop %v404
      %v413 = vmul.f32 %v412, 0.6931472
      %v414 = vlog2.pop %v405
      %v415 = vmul.f32 %v414, 0.6931472
      %v416 = vlog2.pop %v406
      %v417 = vmul.f32 %v416, 0.6931472
      %v418 = vlog2.pop %v407
      %v419 = vmul.f32 %v418, 0.6931472
      %v420 = vadd.f32 %v402, %v405
      %v421 = vadd.f32 %v403, %v406
      %v422 = vadd.f32 %v404, %v407
      %v423 = vmul.f32 %v402, %v405
      %v424 = vmul.f32 %v403, %v406
      %v425 = vmul.f32 %v404, %v407
      %v426 = vrsqrt.pop %v423
      %v427 = vmul.f32 %v423, %v426
      %vm428 = vcmp.eq.f32.partialorder %v423, inf
      %v429 = vsel %vm428, %v423, %v427
      %vm430 = vcmp.eq.f32.partialorder %v423, 0.0
      %v431 = vand.u32 %v423, 2147483648
      %v432 = vsel %vm430, %v431, %v429
      %v433 = vrsqrt.pop %v424
      %v434 = vmul.f32 %v424, %v433
      %vm435 = vcmp.eq.f32.partialorder %v424, inf
      %v436 = vsel %vm435, %v424, %v434
      %vm437 = vcmp.eq.f32.partialorder %v424, 0.0
      %v438 = vand.u32 %v424, 2147483648
      %v439 = vsel %vm437, %v438, %v436
      %v440 = vrsqrt.pop %v425
      %v441 = vmul.f32 %v425, %v440
      %vm442 = vcmp.eq.f32.partialorder %v425, inf
      %v443 = vsel %vm442, %v425, %v441
      %vm444 = vcmp.eq.f32.partialorder %v425, 0.0
      %v445 = vand.u32 %v425, 2147483648
      %v446 = vsel %vm444, %v445, %v443
      %v447 = vmul.f32 %v432, 2.0
      %v448 = vmul.f32 %v439, 2.0
      %v449 = vmul.f32 %v446, 2.0
      %v450 = vsub.f32 %v420, %v447
      %v451 = vsub.f32 %v421, %v448
      %v452 = vsub.f32 %v422, %v449
      %v453 = vsub.f32 %v415, %v409
      %v454 = vsub.f32 %v417, %v411
      %v455 = vsub.f32 %v419, %v413
      %v456 = vand.u32 2147483647, %v453
      %v457 = vand.u32 2147483647, %v454
      %v458 = vand.u32 2147483647, %v455
      %v459 = vmul.f32 %v456, 0.5
      %v460 = vmul.f32 %v457, 0.5
      %v461 = vmul.f32 %v458, 0.5
      %v462 = vld [vmem:[%s229] sm:$0xff]
      %v463 = vadd.f32 %v450, %v451
      %v464 = vadd.f32 %v463, %v452
      %v465 = vadd.f32 %v462, %v464
      %466 = vst [vmem:[%s229] sm:$0xff] %v465
      %v467 = vld [vmem:[%s233] sm:$0xff]
      %v468 = vadd.f32 %v405, %v406
      %v469 = vadd.f32 %v468, %v407
      %v470 = vadd.f32 %v467, %v469
      %471 = vst [vmem:[%s233] sm:$0xff] %v470
      %v472 = vld [vmem:[%s237] sm:$0xff]
      %v473 = vadd.f32 %v459, %v460
      %v474 = vadd.f32 %v473, %v461
      %v475 = vadd.f32 %v472, %v474
      %476 = vst [vmem:[%s237] sm:$0xff] %v475
      %p477 = scmp.lt.s32.totalorder %s20, 1
      %s478 = scalar_select %p477, %s20, 1
      %s479 = smul.addr %s478, 8
      %s480 = scalar_lea.vmem %s2, %s479
      %p481 = scmp.lt.s32.totalorder %s20, 1
      %s482 = scalar_select %p481, %s20, 1
      %s483 = smul.addr %s482, 8
      %s484 = scalar_lea.vmem %s3, %s483
      %p485 = scmp.lt.s32.totalorder %s20, 1
      %s486 = scalar_select %p485, %s20, 1
      %s487 = smul.addr %s486, 8
      %s488 = scalar_lea.vmem %s4, %s487
      // Predicated region
      $region33: #{stft_loss.1} parent=27 // pred_check
        %p489 = pneg %p95
      $region34: #{stft_loss.1} parent=27 // pred_check_branch
        %491 = sbr.rel (%p489) target = $region36
      $region35: #{stft_loss.1} parent=27 // pred_region
        _
      $region36: #{stft_loss.1} parent=27 // pred_fallthru
        _
      // Predicated region
      $region37: #{stft_loss.1} parent=27 // pred_check
        %p492 = pneg %p121
      $region38: #{stft_loss.1} parent=27 // pred_check_branch
        %494 = sbr.rel (%p492) target = $region40
      $region39: #{stft_loss.1} parent=27 // pred_region
        _
      $region40: #{stft_loss.1} parent=27 // pred_fallthru
        _
      // Predicated region
      $region41: #{stft_loss.1} parent=27 // pred_check
        %p495 = pneg %p147
      $region42: #{stft_loss.1} parent=27 // pred_check_branch
        %497 = sbr.rel (%p495) target = $region44
      $region43: #{stft_loss.1} parent=27 // pred_region
        _
      $region44: #{stft_loss.1} parent=27 // pred_fallthru
        _
    $region28: #{stft_loss.1} parent=5 // pred_fallthru
      _
    %p498 = scmp.le.s32.totalorder 2, %s11
    // Predicated region
    $region45: #{stft_loss.1} parent=5 // pred_check
      %p499 = pneg %p498
    $region46: #{stft_loss.1} parent=5 // pred_check_branch
      %501 = sbr.rel (%p499) target = $region48
    $region47: #{stft_loss.1} parent=5 // pred_region
      %s502 = ssub.s32 %s11, 2
      // Predicated region
      $region49: #{stft_loss.1} parent=47 // pred_check
        %p503 = pneg %p101
      $region50: #{stft_loss.1} parent=47 // pred_check_branch
        %505 = sbr.rel (%p503) target = $region52
      $region51: #{stft_loss.1} parent=47 // pred_region
        %p506 = scmp.lt.s32.totalorder %s22, 1
        %s507 = scalar_select %p506, %s22, 1
        %s508 = smul.addr %s507, 8
        %s509 = scalar_lea.vmem %s2, %s508
      $region52: #{stft_loss.1} parent=47 // pred_fallthru
        _
      // Predicated region
      $region53: #{stft_loss.1} parent=47 // pred_check
        %p510 = pneg %p127
      $region54: #{stft_loss.1} parent=47 // pred_check_branch
        %512 = sbr.rel (%p510) target = $region56
      $region55: #{stft_loss.1} parent=47 // pred_region
        %p513 = scmp.lt.s32.totalorder %s22, 1
        %s514 = scalar_select %p513, %s22, 1
        %s515 = smul.addr %s514, 8
        %s516 = scalar_lea.vmem %s3, %s515
      $region56: #{stft_loss.1} parent=47 // pred_fallthru
        _
      // Predicated region
      $region57: #{stft_loss.1} parent=47 // pred_check
        %p517 = pneg %p153
      $region58: #{stft_loss.1} parent=47 // pred_check_branch
        %519 = sbr.rel (%p517) target = $region60
      $region59: #{stft_loss.1} parent=47 // pred_region
        %p520 = scmp.lt.s32.totalorder %s22, 1
        %s521 = scalar_select %p520, %s22, 1
        %s522 = smul.addr %s521, 8
        %s523 = scalar_lea.vmem %s4, %s522
      $region60: #{stft_loss.1} parent=47 // pred_fallthru
        _
    $region48: #{stft_loss.1} parent=5 // pred_fallthru
      _
  $region6: #{stft_loss.1} parent=0 // loop_footer
    %s15 = sadd.s32 1, %s11
  $region7: #{stft_loss.1} parent=0 // loop_footer_branch
    %10 = sbr.rel target = $region3
  $region8: #{stft_loss.1} parent=0 // loop_exit
    _

</llo_original>
